<compile_context>
chip_gen: v7x
topology: tpu7x:2x2x1
jax: 0.10.0
libtpu: 0.0.40
codegen_flags: <defaults>
</compile_context>

<pallas_src>
import functools

import jax
import jax.numpy as jnp
from jax.experimental import pallas as pl
from jax.experimental.pallas import tpu as pltpu


def _round_up(n, m):
    return ((n + m - 1) // m) * m


def _dr_crn_kernel(C, T, PH, H2, r2, r3, xa_ref, w_ref, out_ref):
    """Transposed (batch-on-lanes) fused forward.

    xa_ref : [C+2, TB]   rows 0..C-1 = x.T, row C = cause, row C+1 = 1.0
    w_ref  : packed weight slab (A1 / A2 / A3 blocks, bias = last column)
    out_ref: [T+1, TB]   rows 0..T-1 = log_propensity.T, row T = pred_sel.T
    """
    xa = xa_ref[...]                                   # [C+2, TB] f32
    cause = xa[C:C + 1, :].astype(jnp.int32)           # [1, TB]

    W = w_ref[...]                                     # tiny packed slab
    A1 = W[0:H2 + 1, 0:C + 2]                          # [2H+1, C+2]
    A2 = W[r2:r2 + T + PH + 1, 0:H2 + 1]               # [T+PH+1, 2H+1]
    A3 = W[r3:r3 + T, 0:PH + 1]                        # [T, PH+1]

    # matmul 1: both rep-net first layers (cause column of A1 is zero);
    # last row of h1 is the propagated constant 1 (bias carrier).
    h1 = jnp.maximum(
        jnp.dot(A1, xa, preferred_element_type=jnp.float32), 0.0)      # [2H+1, TB]

    # matmul 2: second rep layers folded into heads + propensity layer 1.
    z = jnp.dot(A2, h1, preferred_element_type=jnp.float32)            # [T+PH+1, TB]
    pred = z[:T, :]                                                     # [T, TB]
    ph = jnp.maximum(z[T:, :], 0.0)                                     # [PH+1, TB] (last row == 1)

    # one-hot selection of the factual treatment (scatter_ in the torch code).
    row_idx = jax.lax.broadcasted_iota(jnp.int32, pred.shape, 0)
    pred_sel = jnp.sum(jnp.where(row_idx == cause, pred, 0.0),
                       axis=0, keepdims=True)                           # [1, TB]

    # matmul 3: propensity second layer + log-softmax over treatments.
    logits = jnp.dot(A3, ph, preferred_element_type=jnp.float32)        # [T, TB]
    logits = logits - jnp.max(logits, axis=0, keepdims=True)
    log_prop = logits - jnp.log(jnp.sum(jnp.exp(logits), axis=0, keepdims=True))

    # Single packed writeback -> one (lane-dense) store per tile.
    out_ref[...] = jnp.concatenate([log_prop, pred_sel], axis=0)        # [T+1, TB]


def _pick_tile_b(B, max_tile=8192):
    """Lane-axis batch tile: 128-aligned, big enough to amortize the ~0.35 us
    per-grid-step overhead, with an even number of tiles preferred (v7x has
    two TensorCores sharing the 'parallel' grid axis)."""
    n = pl.cdiv(B, max_tile)
    if n == 1 and B > 2048:
        n = 2                      # give the second TensorCore work on v7x
    if n > 1 and (n % 2):
        n += 1                     # even grid -> balanced across 2 TCs
    return max(128, _round_up(pl.cdiv(B, n), 128))


def pack_params(params):
    """Fuse all 14 per-layer tensors into ONE packed weight slab (done once).

    Blocks (transposed, bias folded in as the last column; a constant-1 row is
    threaded through the layers so no bias adds happen in the kernel):
      A1 [2H+1, C+2]    : rep-net first layers (cause column zero)
      A2 [T+PH+1, 2H+1] : w2f folded into the stacked heads + propensity L1
      A3 [T, PH+1]      : propensity second layer
    """
    cw1, cb1, cw2, cb2 = params["cw1"], params["cb1"], params["cw2"], params["cb2"]
    ow1, ob1, ow2, ob2 = params["ow1"], params["ob1"], params["ow2"], params["ob2"]
    pw1, pb1, pw2, pb2 = params["pw1"], params["pb1"], params["pw2"], params["pb2"]
    hw, hb = params["hw"], params["hb"]

    f32 = jnp.float32
    C, H = cw1.shape
    Rc = cw2.shape[1]
    Ro = ow2.shape[1]
    PH = pw1.shape[1]
    T = hw.shape[1]
    H2 = 2 * H

    # Fused first layers (consume [x | cause | 1]; cause column is zero).
    w1f = jnp.zeros((C + 1, H2), f32).at[:C, :H].set(cw1).at[:C, H:].set(ow1)
    b1f = jnp.concatenate([cb1, ob1], axis=-1)                     # [1, 2H]

    # Block-diagonal second layers (combined = [conf_rep | out_rep]).
    w2f = jnp.zeros((H2, Rc + Ro), f32).at[:H, :Rc].set(cw2).at[H:, Rc:].set(ow2)
    b2f = jnp.concatenate([cb2, ob2], axis=-1)                     # [1, Rc+Ro]
    pw1f = jnp.zeros((Rc + Ro, PH), f32).at[:Rc, :].set(pw1)       # propensity sees conf_rep only

    # Fold w2f into heads and propensity first layer (no nonlinearity between).
    Wp = w2f @ hw                      # [2H, T]
    bp = b2f @ hw + hb                 # [1, T]
    Wq = w2f @ pw1f                    # [2H, PH]
    bq = b2f @ pw1f + pb1              # [1, PH]
    W2c = jnp.concatenate([Wp, Wq], axis=1)      # [2H, T+PH]
    b2c = jnp.concatenate([bp, bq], axis=1)      # [1, T+PH]

    # Transposed blocks, bias as last column, constant-1 row propagation.
    A1 = jnp.zeros((H2 + 1, C + 2), f32)
    A1 = A1.at[:H2, :C + 1].set(w1f.T).at[:H2, C + 1].set(b1f[0])
    A1 = A1.at[H2, C + 1].set(1.0)
    A2 = jnp.zeros((T + PH + 1, H2 + 1), f32)
    A2 = A2.at[:T + PH, :H2].set(W2c.T).at[:T + PH, H2].set(b2c[0])
    A2 = A2.at[T + PH, H2].set(1.0)
    A3 = jnp.zeros((T, PH + 1), f32)
    A3 = A3.at[:, :PH].set(pw2.T).at[:, PH].set(pb2[0])

    # Pack into one slab; sublane offsets 8-aligned, lane width 128-aligned.
    r2 = _round_up(H2 + 1, 8)
    r3 = r2 + _round_up(T + PH + 1, 8)
    RW = r3 + _round_up(T, 8)
    LW = max(128, _round_up(max(C + 2, H2 + 1, PH + 1), 128))
    slab = jnp.zeros((RW, LW), f32)
    slab = slab.at[:H2 + 1, :C + 2].set(A1)
    slab = slab.at[r2:r2 + T + PH + 1, :H2 + 1].set(A2)
    slab = slab.at[r3:r3 + T, :PH + 1].set(A3)

    meta = dict(C=C, T=T, PH=PH, H2=H2, r2=r2, r3=r3)
    return slab, meta


def dr_crn_multicause_forward(input_mat, params, *, n_treatment, max_tile_b=8192):
    """Pallas implementation of DR_CRN_Multicause.forward (lam_mmd == 0)."""
    input_mat = jnp.asarray(input_mat, jnp.float32)
    B0, Cp1 = input_mat.shape
    C = Cp1 - 1
    T = n_treatment

    cause = input_mat[:, -1:].astype(jnp.int32)        # module return value

    slab, meta = pack_params(params)
    assert meta["C"] == C and meta["T"] == T

    tile_b = _pick_tile_b(B0, max_tile_b)
    grid_b = pl.cdiv(B0, tile_b)
    B = grid_b * tile_b                                # cdiv-padded batch

    # One wrapper pass: transpose (batch -> lanes), pad, append the ones row.
    xa = jnp.zeros((Cp1 + 1, B), jnp.float32)
    xa = xa.at[:Cp1, :B0].set(input_mat.T)
    xa = xa.at[Cp1, :].set(1.0)

    kernel = functools.partial(_dr_crn_kernel, C, T, meta["PH"], meta["H2"],
                               meta["r2"], meta["r3"])

    packed_T = pl.pallas_call(
        kernel,
        grid=(grid_b,),
        in_specs=[
            pl.BlockSpec((Cp1 + 1, tile_b), lambda i: (0, i)),   # input tile
            pl.BlockSpec(slab.shape, lambda i: (0, 0)),          # weight slab
        ],
        out_specs=pl.BlockSpec((T + 1, tile_b), lambda i: (0, i)),
        out_shape=jax.ShapeDtypeStruct((T + 1, B), jnp.float32),
        compiler_params=pltpu.CompilerParams(
            dimension_semantics=("parallel",)),
    )(xa, slab)

    log_prop = packed_T[:T, :B0].T                     # [B0, T]
    pred_sel = packed_T[T:, :B0].T                     # [B0, 1]

    mmd = 0.0  # lam_mmd == 0.0 path of the reference module
    return pred_sel, log_prop, mmd, cause


def init_params(key, n_confounder, n_confounder_rep, n_outcome_rep, n_treatment):
    """Deterministic synthetic parameter init matching the nn.Module shapes."""
    C = n_confounder
    H = C + 1
    Rc, Ro, T = n_confounder_rep, n_outcome_rep, n_treatment
    PH = Rc + 1

    def lin(k, fan_in, fan_out):
        kw, kb = jax.random.split(k)
        scale = 1.0 / jnp.sqrt(fan_in)
        w = jax.random.uniform(kw, (fan_in, fan_out), jnp.float32, -scale, scale)
        b = jax.random.uniform(kb, (1, fan_out), jnp.float32, -scale, scale)
        return w, b

    ks = jax.random.split(key, 8)
    cw1, cb1 = lin(ks[0], C, H)
    cw2, cb2 = lin(ks[1], H, Rc)
    ow1, ob1 = lin(ks[2], C, H)
    ow2, ob2 = lin(ks[3], H, Ro)
    pw1, pb1 = lin(ks[4], Rc, PH)
    pw2, pb2 = lin(ks[5], PH, T)
    # n_treatment heads, each Linear(Rc + Ro, 1), stacked column-wise.
    hw, hb = lin(ks[6], Rc + Ro, T)

    return dict(
        cw1=cw1, cb1=cb1, cw2=cw2, cb2=cb2,
        ow1=ow1, ob1=ob1, ow2=ow2, ob2=ob2,
        pw1=pw1, pb1=pb1, pw2=pw2, pb2=pb2,
        hw=hw, hb=hb,
    )


def reference_forward(input_mat, params, n_treatment):
    """Pure-JAX reference mirroring the PyTorch forward (lam_mmd == 0)."""
    x = input_mat[:, :-1].astype(jnp.float32)
    cause = input_mat[:, -1:].astype(jnp.int32)

    def mlp2(h, w1, b1, w2, b2):
        return jnp.maximum(h @ w1 + b1, 0.0) @ w2 + b2

    conf = mlp2(x, params["cw1"], params["cb1"], params["cw2"], params["cb2"])
    outc = mlp2(x, params["ow1"], params["ob1"], params["ow2"], params["ob2"])
    comb = jnp.concatenate([conf, outc], axis=-1)
    pred = comb @ params["hw"] + params["hb"]
    onehot = jax.nn.one_hot(cause[:, 0], n_treatment, dtype=jnp.float32)
    pred_sel = jnp.sum(pred * onehot, axis=1, keepdims=True)
    logits = mlp2(conf, params["pw1"], params["pb1"], params["pw2"], params["pb2"])
    log_prop = jax.nn.log_softmax(logits, axis=-1)
    return pred_sel, log_prop, 0.0, cause


if __name__ == "__main__":
    # Small, module-consistent shapes.
    n_confounder = 16
    n_cause = 3
    n_outcome = 1
    n_confounder_rep = 8
    n_outcome_rep = 8
    n_treatment = 2 ** n_cause   # 8
    batch = 64

    key = jax.random.PRNGKey(0)
    k_param, k_x, k_c = jax.random.split(key, 3)

    params = init_params(
        k_param, n_confounder, n_confounder_rep, n_outcome_rep, n_treatment
    )

    x = jax.random.normal(k_x, (batch, n_confounder), jnp.float32)
    cause = jax.random.randint(k_c, (batch, 1), 0, n_treatment).astype(jnp.float32)
    input_mat = jnp.concatenate([x, cause], axis=-1)   # [B, n_confounder + 1]

    fwd = functools.partial(dr_crn_multicause_forward, n_treatment=n_treatment)
    pred_sel, log_prop, mmd, cause_out = fwd(input_mat, params)
    jax.block_until_ready((pred_sel, log_prop, cause_out))

    # Sanity-check against a pure-JAX reference of the same math.
    ref_sel, ref_lp, _, _ = reference_forward(input_mat, params, n_treatment)
    assert pred_sel.shape == (batch, 1)
    assert log_prop.shape == (batch, n_treatment)
    assert cause_out.shape == (batch, 1)
    # (w2 -> heads/propensity fold reassociates f32 sums; drift is ~1e-6.)
    assert jnp.allclose(pred_sel, ref_sel, atol=5e-5, rtol=5e-5)
    assert jnp.allclose(log_prop, ref_lp, atol=5e-5, rtol=5e-5)

    print("KERNEL_OK")
</pallas_src>

<mosaic_0001>
module attributes {stable_mosaic.version = 11 : i64} {
  func.func @_dr_crn_kernel(%arg0: i32, %arg1: memref<18x128xf32, #tpu.memory_space<vmem>>, %arg2: memref<72x128xf32, #tpu.memory_space<vmem>>, %arg3: memref<9x128xf32, #tpu.memory_space<vmem>>) attributes {dimension_semantics = [#tpu.dimension_semantics<parallel>], iteration_bounds = array<i64: 1>, scalar_prefetch = 0 : i64, scratch_operands = 0 : i64, tpu.core_type = #tpu.core_type<tc>, window_params = [{transform_indices = @transform_0, window_bounds = array<i64: 18, 128>}, {pipeline_mode = #tpu.pipeline_mode<synchronous>, transform_indices = @transform_1, window_bounds = array<i64: 72, 128>}, {transform_indices = @transform_2, window_bounds = array<i64: 9, 128>}]} {
    %c0 = arith.constant 0 : index
    %c0_0 = arith.constant 0 : index
    %0 = vector.load %arg1[%c0, %c0_0] : memref<18x128xf32, #tpu.memory_space<vmem>>, vector<18x128xf32>
    %1 = vector.extract_strided_slice %0 {offsets = [16, 0], sizes = [1, 128], strides = [1, 1]} : vector<18x128xf32> to vector<1x128xf32>
    %2 = arith.fptosi %1 : vector<1x128xf32> to vector<1x128xi32>
    %c0_1 = arith.constant 0 : index
    %c0_2 = arith.constant 0 : index
    %3 = vector.load %arg2[%c0_1, %c0_2] : memref<72x128xf32, #tpu.memory_space<vmem>>, vector<72x128xf32>
    %4 = vector.extract_strided_slice %3 {offsets = [0, 0], sizes = [35, 18], strides = [1, 1]} : vector<72x128xf32> to vector<35x18xf32>
    %5 = vector.extract_strided_slice %3 {offsets = [40, 0], sizes = [18, 35], strides = [1, 1]} : vector<72x128xf32> to vector<18x35xf32>
    %6 = vector.extract_strided_slice %3 {offsets = [64, 0], sizes = [8, 10], strides = [1, 1]} : vector<72x128xf32> to vector<8x10xf32>
    %cst = arith.constant dense<0.000000e+00> : vector<35x128xf32>
    %7 = tpu.matmul %4, %0, %cst {dimension_numbers = #tpu.dot_dimension_numbers<[1], [0], [0], [1], [0, 0, 1, 1], [], []>} : vector<35x18xf32>, vector<18x128xf32>, vector<35x128xf32> -> vector<35x128xf32>
    %cst_3 = arith.constant 0.000000e+00 : f32
    %8 = vector.broadcast %cst_3 : f32 to vector<35x128xf32>
    %9 = arith.maximumf %7, %8 : vector<35x128xf32>
    %cst_4 = arith.constant dense<0.000000e+00> : vector<18x128xf32>
    %10 = tpu.matmul %5, %9, %cst_4 {dimension_numbers = #tpu.dot_dimension_numbers<[1], [0], [0], [1], [0, 0, 1, 1], [], []>} : vector<18x35xf32>, vector<35x128xf32>, vector<18x128xf32> -> vector<18x128xf32>
    %11 = vector.extract_strided_slice %10 {offsets = [0, 0], sizes = [8, 128], strides = [1, 1]} : vector<18x128xf32> to vector<8x128xf32>
    %12 = vector.extract_strided_slice %10 {offsets = [8, 0], sizes = [10, 128], strides = [1, 1]} : vector<18x128xf32> to vector<10x128xf32>
    %cst_5 = arith.constant 0.000000e+00 : f32
    %13 = vector.broadcast %cst_5 : f32 to vector<10x128xf32>
    %14 = arith.maximumf %12, %13 : vector<10x128xf32>
    %15 = tpu.iota {dimensions = array<i32: 0>} : vector<8x128xi32>
    %16 = vector.broadcast %2 : vector<1x128xi32> to vector<8x128xi32>
    %17 = arith.cmpi eq, %15, %16 : vector<8x128xi32>
    %cst_6 = arith.constant 0.000000e+00 : f32
    %18 = vector.broadcast %cst_6 : f32 to vector<8x128xf32>
    %19 = arith.select %17, %11, %18 : vector<8x128xi1>, vector<8x128xf32>
    %cst_7 = arith.constant dense<0.000000e+00> : vector<128xf32>
    %20 = vector.multi_reduction <add>, %19, %cst_7 [0] : vector<8x128xf32> to vector<128xf32>
    %21 = vector.shape_cast %20 : vector<128xf32> to vector<1x128xf32>
    %cst_8 = arith.constant dense<0.000000e+00> : vector<8x128xf32>
    %22 = tpu.matmul %6, %14, %cst_8 {dimension_numbers = #tpu.dot_dimension_numbers<[1], [0], [0], [1], [0, 0, 1, 1], [], []>} : vector<8x10xf32>, vector<10x128xf32>, vector<8x128xf32> -> vector<8x128xf32>
    %cst_9 = arith.constant dense<0xFF800000> : vector<128xf32>
    %23 = vector.multi_reduction <maximumf>, %22, %cst_9 [0] : vector<8x128xf32> to vector<128xf32>
    %24 = vector.shape_cast %23 : vector<128xf32> to vector<1x128xf32>
    %25 = vector.broadcast %24 : vector<1x128xf32> to vector<8x128xf32>
    %26 = arith.subf %22, %25 : vector<8x128xf32>
    %27 = math.exp %26 : vector<8x128xf32>
    %cst_10 = arith.constant dense<0.000000e+00> : vector<128xf32>
    %28 = vector.multi_reduction <add>, %27, %cst_10 [0] : vector<8x128xf32> to vector<128xf32>
    %29 = vector.shape_cast %28 : vector<128xf32> to vector<1x128xf32>
    %30 = math.log %29 : vector<1x128xf32>
    %31 = vector.broadcast %30 : vector<1x128xf32> to vector<8x128xf32>
    %32 = arith.subf %26, %31 : vector<8x128xf32>
    %33 = tpu.concatenate %32, %21 in 0 : vector<8x128xf32>, vector<1x128xf32> -> vector<9x128xf32>
    %c0_11 = arith.constant 0 : index
    %c0_12 = arith.constant 0 : index
    %34 = vector.load %arg3[%c0_11, %c0_12] : memref<9x128xf32, #tpu.memory_space<vmem>>, vector<9x128xf32>
    tpu.vector_store %arg3[%c0_11, %c0_12], %33 {strides = array<i32>} : memref<9x128xf32, #tpu.memory_space<vmem>>, vector<9x128xf32>,
    return
  }
  func.func @transform_0(%arg0: i32) -> (i32, i32) {
    %c0_i32 = arith.constant 0 : i32
    %c0_i32_0 = arith.constant 0 : i32
    return %c0_i32, %arg0 : i32, i32
  }
  func.func @transform_1(%arg0: i32) -> (i32, i32) {
    %c0_i32 = arith.constant 0 : i32
    %c0_i32_0 = arith.constant 0 : i32
    %c0_i32_1 = arith.constant 0 : i32
    return %c0_i32, %c0_i32_0 : i32, i32
  }
  func.func @transform_2(%arg0: i32) -> (i32, i32) {
    %c0_i32 = arith.constant 0 : i32
    %c0_i32_0 = arith.constant 0 : i32
    return %c0_i32, %arg0 : i32, i32
  }
}

</mosaic_0001>

<llo_original>
// kernel: tpu_custom_call.1
$region0: #{tpu_custom_call.1}
  #allocation0 [shape = 'u32[]', space=smem, size = 0x4, offset = 0x4, fixed_abs, tag = 'smem constant byte address 0x4 - core index']
  #allocation1 [shape = 'u32[144,128]{1,0:T(1,128)}', space=vmem, size = 0x12000, scoped, tag = 'internal scratch']
  %s0 = inlined_call_operand.hbm [shape: f32[18,128], index: 0, kind: input, shape index: {}]
  %s1 = inlined_call_operand.hbm [shape: f32[72,128], index: 1, kind: input, shape index: {}]
  %s2 = inlined_call_operand.hbm [shape: f32[9,128], index: 2, kind: output, shape index: {}]
  %s3 = sld [smem:[#allocation0]]
  $region26: #{tpu_custom_call.1} parent=0
    _
  %s5 = ssub.s32 1, %s3
  %s6 = scalar_select 0, %s5, %s3
  $region1: #{tpu_custom_call.1} parent=0
    #allocation2 [shape = 'u8[12288]{0}', space=vmem, size = 0x3000, scoped, tag = 'input window, operand 0, single buffered']
    #allocation3 [shape = 's32[1]{0}', space=sflag, size = 0x4, scoped, tag = 'scoped memory for tpu_custom_call.1']
    #allocation4 [shape = 's32[1]{0}', space=sflag, size = 0x4, scoped, tag = 'scoped memory for tpu_custom_call.1']
    #allocation5 [shape = 'u8[36864]{0}', space=vmem, size = 0x9000, scoped, tag = 'input window, operand 1, single buffered']
    #allocation6 [shape = 's32[1]{0}', space=sflag, size = 0x4, scoped, tag = 'scoped memory for tpu_custom_call.1']
    #allocation7 [shape = 'u8[8192]{0}', space=vmem, size = 0x2000, scoped, tag = 'output window, operand 0, single buffered']
    %7 = vsyncpa [#allocation3], 0
    %8 = vsyncpa [#allocation6], 0
    %9 = vsyncpa [#allocation4], 0
    // Predicated region
    $region2: #{tpu_custom_call.1} parent=1 // pred_check
      _
    $region3: #{tpu_custom_call.1} parent=1 // pred_check_branch
      %11 = sbr.rel (0) target = $region5
    $region4: #{tpu_custom_call.1} parent=1 // pred_region
      %s13 = ssub.s32 384, 384
      %14 = vsyncadd [#allocation3], %s13
      %s15 = sshll.u32 [#allocation2], 4
      %s16 = int_to_ptr.vmem [resolvable:$true] %s15
      %21 = dma.hbm_to_vmem [thread:$0]  %s0, 384, %s16, [#allocation3], 128, 128, 8
    $region5: #{tpu_custom_call.1} parent=1 // pred_fallthru
      _
    // Predicated region
    $region6: #{tpu_custom_call.1} parent=1 // pred_check
      _
    $region7: #{tpu_custom_call.1} parent=1 // pred_check_branch
      %23 = sbr.rel (0) target = $region9
    $region8: #{tpu_custom_call.1} parent=1 // pred_region
      %s25 = ssub.s32 1152, 1152
      %26 = vsyncadd [#allocation6], %s25
      %s27 = sshll.u32 [#allocation5], 4
      %s28 = int_to_ptr.vmem [resolvable:$true] %s27
      %33 = dma.hbm_to_vmem [thread:$0]  %s1, 1152, %s28, [#allocation6], 128, 128, 8
    $region9: #{tpu_custom_call.1} parent=1 // pred_fallthru
      _
    // Predicated region
    $region10: #{tpu_custom_call.1} parent=1 // pred_check
      _
    $region11: #{tpu_custom_call.1} parent=1 // pred_check_branch
      %35 = sbr.rel (0) target = $region13
    $region12: #{tpu_custom_call.1} parent=1 // pred_region
      %36 = dma.done [#allocation3], 384
    $region13: #{tpu_custom_call.1} parent=1 // pred_fallthru
      _
    // Predicated region
    $region14: #{tpu_custom_call.1} parent=1 // pred_check
      _
    $region15: #{tpu_custom_call.1} parent=1 // pred_check_branch
      %38 = sbr.rel (0) target = $region17
    $region16: #{tpu_custom_call.1} parent=1 // pred_region
      %39 = dma.done [#allocation6], 1152
    $region17: #{tpu_custom_call.1} parent=1 // pred_fallthru
      _
    %v40 = vld [vmem:[#allocation2] sm:$0xff]
    %v41 = vld [vmem:[#allocation2 + $0x8] sm:$0xff]
    %v42 = vld [vmem:[#allocation2 + $0x10] sm:$0x3]
    %v43 = vcvt.f32.s32.to.zero.pseudo %v42
    %v44 = vld [vmem:[#allocation5] sm:$0xff]
    %v45 = vld [vmem:[#allocation5 + $0x8] sm:$0xff]
    %v46 = vld [vmem:[#allocation5 + $0x10] sm:$0xff]
    %v47 = vld [vmem:[#allocation5 + $0x18] sm:$0xff]
    %v48 = vld [vmem:[#allocation5 + $0x20] sm:$0xff]
    %v49 = vld [vmem:[#allocation5 + $0x28] sm:$0xff]
    %v50 = vld [vmem:[#allocation5 + $0x30] sm:$0xff]
    %v51 = vld [vmem:[#allocation5 + $0x38] sm:$0xff]
    %v52 = vld [vmem:[#allocation5 + $0x40] sm:$0xff]
    %vm53 = vcmask 146432
    %v55 = vsel %vm53, %v44, 0
    %v58 = vsel %vm53, %v45, 0
    %v61 = vsel %vm53, %v46, 0
    %v64 = vsel %vm53, %v47, 0
    %v67 = vsel %vm53, %v48, 0
    %vm69 = vcmask 1041408
    %v71 = vsel %vm69, %v42, 0
    %73 = vmatprep.subr.mxu0 0.0
    %74 = vmatpush1.msra.mxu0 %v40
    %75 = vmatprep.subr.mxu0 0.0
    %76 = vmatpush1.msra.mxu0 %v41
    %77 = vmatprep.subr.mxu0 0.0
    %78 = vmatpush1.msra.mxu0 %v71
    %79 = vmatprep.subr.mxu0 0.0
    %80 = vmatpush1.msra.mxu0 0.0
    %81 = vmatprep.subr.mxu0 0.0
    %82 = vmatpush1.msra.mxu0 0.0
    %83 = vmatprep.subr.mxu0 0.0
    %84 = vmatpush1.msra.mxu0 0.0
    %85 = vmatprep.subr.mxu0 0.0
    %86 = vmatpush1.msra.mxu0 0.0
    %87 = vmatprep.subr.mxu0 0.0
    %88 = vmatpush1.msra.mxu0 0.0
    %89 = vmatprep.subr.mxu0 0.0
    %90 = vmatpush1.msra.mxu0 0.0
    %91 = vmatprep.subr.mxu0 0.0
    %92 = vmatpush1.msra.mxu0 0.0
    %93 = vmatprep.subr.mxu0 0.0
    %94 = vmatpush1.msra.mxu0 0.0
    %95 = vmatprep.subr.mxu0 0.0
    %96 = vmatpush1.msra.mxu0 0.0
    %97 = vmatprep.subr.mxu0 0.0
    %98 = vmatpush1.msra.mxu0 0.0
    %99 = vmatprep.subr.mxu0 0.0
    %100 = vmatpush1.msra.mxu0 0.0
    %101 = vmatprep.subr.mxu0 0.0
    %102 = vmatpush1.msra.mxu0 0.0
    %103 = vmatprep.subr.mxu0 0.0
    %104 = vmatpush1.msra.mxu0 0.0
    %105 = vmatprep.subr.mxu0 0.0
    %106 = vmatpush1.msra.mxu0 0.0
    %107 = vmatprep.subr.mxu0 0.0
    %108 = vmatpush1.msra.mxu0 0.0
    %109 = vmatprep.subr.mxu0 0.0
    %110 = vmatpush1.msra.mxu0 0.0
    %111 = vmatprep.subr.mxu0 0.0
    %112 = vmatpush1.msra.mxu0 0.0
    %113 = vmatprep.subr.mxu0 0.0
    %114 = vmatpush1.msra.mxu0 0.0
    %115 = vmatprep.subr.mxu0 0.0
    %116 = vmatpush1.msra.mxu0 0.0
    %117 = vmatprep.subr.mxu0 0.0
    %118 = vmatpush1.msra.mxu0 0.0
    %119 = vmatprep.subr.mxu0 0.0
    %120 = vmatpush1.msra.mxu0 0.0
    %121 = vmatprep.subr.mxu0 0.0
    %122 = vmatpush1.msra.mxu0 0.0
    %123 = vmatprep.subr.mxu0 0.0
    %124 = vmatpush1.msra.mxu0 0.0
    %125 = vmatprep.subr.mxu0 0.0
    %126 = vmatpush1.msra.mxu0 0.0
    %127 = vmatprep.subr.mxu0 0.0
    %128 = vmatpush1.msra.mxu0 0.0
    %129 = vmatprep.subr.mxu0 0.0
    %130 = vmatpush1.msra.mxu0 0.0
    %131 = vmatprep.subr.mxu0 0.0
    %132 = vmatpush1.msra.mxu0 0.0
    %133 = vmatprep.subr.mxu0 0.0
    %134 = vmatpush1.msra.mxu0 0.0
    %135 = vmatprep.subr.mxu0 0.0
    %136 = vmatpush1.msra.mxu0 0.0
    %137 = vmatprep.mubr.f32.mxu0 0.0
    %138 = vmatmul.mubr.f32.gmra.mrb[0].mxu0 %v55
    %v139 = vpop.f32.mrb[0].mxu0
    %v140 = vadd.f32 0.0, %v139
    %v141 = vpop.f32.mrb[0].mxu0
    %142 = vmatprep.mubr.f32.mxu0 0.0
    %143 = vmatmul.mubr.f32.gmra.mrb[0].mxu0 %v58
    %v144 = vpop.f32.mrb[0].mxu0
    %v145 = vadd.f32 0.0, %v144
    %v146 = vpop.f32.mrb[0].mxu0
    %147 = vmatprep.mubr.f32.mxu0 0.0
    %148 = vmatmul.mubr.f32.gmra.mrb[0].mxu0 %v61
    %v149 = vpop.f32.mrb[0].mxu0
    %v150 = vadd.f32 0.0, %v149
    %v151 = vpop.f32.mrb[0].mxu0
    %152 = vmatprep.mubr.f32.mxu0 0.0
    %153 = vmatmul.mubr.f32.gmra.mrb[0].mxu0 %v64
    %v154 = vpop.f32.mrb[0].mxu0
    %v155 = vadd.f32 0.0, %v154
    %v156 = vpop.f32.mrb[0].mxu0
    %157 = vmatprep.mubr.f32.mxu0 0.0
    %158 = vmatmul.mubr.f32.gmra.mrb[0].mxu0 %v67
    %v159 = vpop.f32.mrb[0].mxu0
    %v160 = vadd.f32 0.0, %v159
    %v161 = vpop.f32.mrb[0].mxu0
    %162 = vdwg.mxu0
    %v163 = vmax.f32 %v140, 0.0
    %v164 = vmax.f32 %v145, 0.0
    %v165 = vmax.f32 %v150, 0.0
    %v166 = vmax.f32 %v155, 0.0
    %v167 = vmax.f32 %v160, 0.0
    %vm168 = vcmask 285696
    %v170 = vsel %vm168, %v49, 0
    %v173 = vsel %vm168, %v50, 0
    %v176 = vsel %vm168, %v51, 0
    %vm178 = vcmask 1042432
    %v180 = vsel %vm178, %v167, 0
    %182 = vmatprep.subr.mxu0 0.0
    %183 = vmatpush1.msra.mxu0 %v163
    %184 = vmatprep.subr.mxu0 0.0
    %185 = vmatpush1.msra.mxu0 %v164
    %186 = vmatprep.subr.mxu0 0.0
    %187 = vmatpush1.msra.mxu0 %v165
    %188 = vmatprep.subr.mxu0 0.0
    %189 = vmatpush1.msra.mxu0 %v166
    %190 = vmatprep.subr.mxu0 0.0
    %191 = vmatpush1.msra.mxu0 %v180
    %192 = vmatprep.subr.mxu0 0.0
    %193 = vmatpush1.msra.mxu0 0.0
    %194 = vmatprep.subr.mxu0 0.0
    %195 = vmatpush1.msra.mxu0 0.0
    %196 = vmatprep.subr.mxu0 0.0
    %197 = vmatpush1.msra.mxu0 0.0
    %198 = vmatprep.subr.mxu0 0.0
    %199 = vmatpush1.msra.mxu0 0.0
    %200 = vmatprep.subr.mxu0 0.0
    %201 = vmatpush1.msra.mxu0 0.0
    %202 = vmatprep.subr.mxu0 0.0
    %203 = vmatpush1.msra.mxu0 0.0
    %204 = vmatprep.subr.mxu0 0.0
    %205 = vmatpush1.msra.mxu0 0.0
    %206 = vmatprep.subr.mxu0 0.0
    %207 = vmatpush1.msra.mxu0 0.0
    %208 = vmatprep.subr.mxu0 0.0
    %209 = vmatpush1.msra.mxu0 0.0
    %210 = vmatprep.subr.mxu0 0.0
    %211 = vmatpush1.msra.mxu0 0.0
    %212 = vmatprep.subr.mxu0 0.0
    %213 = vmatpush1.msra.mxu0 0.0
    %214 = vmatprep.subr.mxu0 0.0
    %215 = vmatpush1.msra.mxu0 0.0
    %216 = vmatprep.subr.mxu0 0.0
    %217 = vmatpush1.msra.mxu0 0.0
    %218 = vmatprep.subr.mxu0 0.0
    %219 = vmatpush1.msra.mxu0 0.0
    %220 = vmatprep.subr.mxu0 0.0
    %221 = vmatpush1.msra.mxu0 0.0
    %222 = vmatprep.subr.mxu0 0.0
    %223 = vmatpush1.msra.mxu0 0.0
    %224 = vmatprep.subr.mxu0 0.0
    %225 = vmatpush1.msra.mxu0 0.0
    %226 = vmatprep.subr.mxu0 0.0
    %227 = vmatpush1.msra.mxu0 0.0
    %228 = vmatprep.subr.mxu0 0.0
    %229 = vmatpush1.msra.mxu0 0.0
    %230 = vmatprep.subr.mxu0 0.0
    %231 = vmatpush1.msra.mxu0 0.0
    %232 = vmatprep.subr.mxu0 0.0
    %233 = vmatpush1.msra.mxu0 0.0
    %234 = vmatprep.subr.mxu0 0.0
    %235 = vmatpush1.msra.mxu0 0.0
    %236 = vmatprep.subr.mxu0 0.0
    %237 = vmatpush1.msra.mxu0 0.0
    %238 = vmatprep.subr.mxu0 0.0
    %239 = vmatpush1.msra.mxu0 0.0
    %240 = vmatprep.subr.mxu0 0.0
    %241 = vmatpush1.msra.mxu0 0.0
    %242 = vmatprep.subr.mxu0 0.0
    %243 = vmatpush1.msra.mxu0 0.0
    %244 = vmatprep.subr.mxu0 0.0
    %245 = vmatpush1.msra.mxu0 0.0
    %246 = vmatprep.mubr.f32.mxu0 0.0
    %247 = vmatmul.mubr.f32.gmra.mrb[0].mxu0 %v170
    %v248 = vpop.f32.mrb[0].mxu0
    %v249 = vadd.f32 0.0, %v248
    %v250 = vpop.f32.mrb[0].mxu0
    %251 = vmatprep.mubr.f32.mxu0 0.0
    %252 = vmatmul.mubr.f32.gmra.mrb[0].mxu0 %v173
    %v253 = vpop.f32.mrb[0].mxu0
    %v254 = vadd.f32 0.0, %v253
    %v255 = vpop.f32.mrb[0].mxu0
    %256 = vmatprep.mubr.f32.mxu0 0.0
    %257 = vmatmul.mubr.f32.gmra.mrb[0].mxu0 %v176
    %v258 = vpop.f32.mrb[0].mxu0
    %v259 = vadd.f32 0.0, %v258
    %v260 = vpop.f32.mrb[0].mxu0
    %261 = vdwg.mxu0
    %v262 = vmax.f32 %v254, 0.0
    %v263 = vmax.f32 %v259, 0.0
    %v264 = vlaneseq
    %v265 = vshrl.u32 %v264, 7
    %v266 = vlaneseq
    %v267 = vshrl.u32 %v266, 7
    %v268 = vsub.s32 0, %v267
    %v269 = vrot.slane %v43, %v268
    %vm270 = vcmp.eq.s32.totalorder %v265, %v269
    %v271 = vsel %vm270, %v249, 0.0
    %v272 = vrot.slane %v271, 4
    %v273 = vadd.f32 %v271, %v272
    %v274 = vrot.slane %v273, 2
    %v275 = vadd.f32 %v273, %v274
    %v276 = vrot.slane %v275, 1
    %v277 = vadd.f32 %v275, %v276
    %vm278 = vcmask 80896
    %v280 = vsel %vm278, %v52, 0
    %v283 = vsel %vm69, %v263, 0
    %285 = vmatprep.subr.mxu0 0.0
    %286 = vmatpush1.msra.mxu0 %v262
    %287 = vmatprep.subr.mxu0 0.0
    %288 = vmatpush1.msra.mxu0 %v283
    %289 = vmatprep.subr.mxu0 0.0
    %290 = vmatpush1.msra.mxu0 0.0
    %291 = vmatprep.subr.mxu0 0.0
    %292 = vmatpush1.msra.mxu0 0.0
    %293 = vmatprep.subr.mxu0 0.0
    %294 = vmatpush1.msra.mxu0 0.0
    %295 = vmatprep.subr.mxu0 0.0
    %296 = vmatpush1.msra.mxu0 0.0
    %297 = vmatprep.subr.mxu0 0.0
    %298 = vmatpush1.msra.mxu0 0.0
    %299 = vmatprep.subr.mxu0 0.0
    %300 = vmatpush1.msra.mxu0 0.0
    %301 = vmatprep.subr.mxu0 0.0
    %302 = vmatpush1.msra.mxu0 0.0
    %303 = vmatprep.subr.mxu0 0.0
    %304 = vmatpush1.msra.mxu0 0.0
    %305 = vmatprep.subr.mxu0 0.0
    %306 = vmatpush1.msra.mxu0 0.0
    %307 = vmatprep.subr.mxu0 0.0
    %308 = vmatpush1.msra.mxu0 0.0
    %309 = vmatprep.subr.mxu0 0.0
    %310 = vmatpush1.msra.mxu0 0.0
    %311 = vmatprep.subr.mxu0 0.0
    %312 = vmatpush1.msra.mxu0 0.0
    %313 = vmatprep.subr.mxu0 0.0
    %314 = vmatpush1.msra.mxu0 0.0
    %315 = vmatprep.subr.mxu0 0.0
    %316 = vmatpush1.msra.mxu0 0.0
    %317 = vmatprep.subr.mxu0 0.0
    %318 = vmatpush1.msra.mxu0 0.0
    %319 = vmatprep.subr.mxu0 0.0
    %320 = vmatpush1.msra.mxu0 0.0
    %321 = vmatprep.subr.mxu0 0.0
    %322 = vmatpush1.msra.mxu0 0.0
    %323 = vmatprep.subr.mxu0 0.0
    %324 = vmatpush1.msra.mxu0 0.0
    %325 = vmatprep.subr.mxu0 0.0
    %326 = vmatpush1.msra.mxu0 0.0
    %327 = vmatprep.subr.mxu0 0.0
    %328 = vmatpush1.msra.mxu0 0.0
    %329 = vmatprep.subr.mxu0 0.0
    %330 = vmatpush1.msra.mxu0 0.0
    %331 = vmatprep.subr.mxu0 0.0
    %332 = vmatpush1.msra.mxu0 0.0
    %333 = vmatprep.subr.mxu0 0.0
    %334 = vmatpush1.msra.mxu0 0.0
    %335 = vmatprep.subr.mxu0 0.0
    %336 = vmatpush1.msra.mxu0 0.0
    %337 = vmatprep.subr.mxu0 0.0
    %338 = vmatpush1.msra.mxu0 0.0
    %339 = vmatprep.subr.mxu0 0.0
    %340 = vmatpush1.msra.mxu0 0.0
    %341 = vmatprep.subr.mxu0 0.0
    %342 = vmatpush1.msra.mxu0 0.0
    %343 = vmatprep.subr.mxu0 0.0
    %344 = vmatpush1.msra.mxu0 0.0
    %345 = vmatprep.subr.mxu0 0.0
    %346 = vmatpush1.msra.mxu0 0.0
    %347 = vmatprep.subr.mxu0 0.0
    %348 = vmatpush1.msra.mxu0 0.0
    %349 = vmatprep.mubr.f32.mxu0 0.0
    %350 = vmatmul.mubr.f32.gmra.mrb[0].mxu0 %v280
    %v351 = vpop.f32.mrb[0].mxu0
    %v352 = vadd.f32 0.0, %v351
    %v353 = vpop.f32.mrb[0].mxu0
    %354 = vdwg.mxu0
    %v355 = vrot.slane %v352, 4
    %v356 = vmax.f32 %v352, %v355
    %v357 = vrot.slane %v356, 2
    %v358 = vmax.f32 %v356, %v357
    %v359 = vrot.slane %v358, 1
    %v360 = vmax.f32 %v358, %v359
    %v361 = vsub.f32 %v352, %v360
    %v362 = vmul.f32 %v361, 1.442695
    %v363 = vpow.pop %v362
    %v364 = vrot.slane %v363, 4
    %v365 = vadd.f32 %v363, %v364
    %v366 = vrot.slane %v365, 2
    %v367 = vadd.f32 %v365, %v366
    %v368 = vrot.slane %v367, 1
    %v369 = vadd.f32 %v367, %v368
    %v370 = vlog2.pop %v369
    %v371 = vmul.f32 %v370, 0.6931472
    %v372 = vsub.f32 %v361, %v371
    %373 = vst [vmem:[#allocation7] sm:$0xff] %v372
    %374 = vst [vmem:[#allocation7 + $0x8] sm:$0x1] %v277
    // Predicated region
    $region18: #{tpu_custom_call.1} parent=1 // pred_check
      _
    $region19: #{tpu_custom_call.1} parent=1 // pred_check_branch
      %376 = sbr.rel (0) target = $region21
    $region20: #{tpu_custom_call.1} parent=1 // pred_region
      %s378 = ssub.s32 256, 256
      %379 = vsyncadd [#allocation4], %s378
      %s380 = sshll.u32 [#allocation7], 4
      %s381 = int_to_ptr.vmem [resolvable:$true] %s380
      %386 = dma.vmem_to_hbm [thread:$0]  %s381, 256, %s2, [#allocation4], 128, 128, 8
    $region21: #{tpu_custom_call.1} parent=1 // pred_fallthru
      _
    // Predicated region
    $region22: #{tpu_custom_call.1} parent=1 // pred_check
      _
    $region23: #{tpu_custom_call.1} parent=1 // pred_check_branch
      %388 = sbr.rel (0) target = $region25
    $region24: #{tpu_custom_call.1} parent=1 // pred_region
      %389 = dma.done [#allocation4], 256
    $region25: #{tpu_custom_call.1} parent=1 // pred_fallthru
      _
    %390 = vsyncpa [#allocation3], 1
    %391 = vsyncpa [#allocation6], 1
    %392 = vsyncpa [#allocation4], 1

</llo_original>
